<compile_context>
chip_gen: v5e
topology: v5e:2x2
jax: 0.10.0
libtpu: 0.0.40
codegen_flags: <defaults>
</compile_context>

<pallas_src>
import functools

import jax
import jax.numpy as jnp
from jax.experimental import pallas as pl
from jax.experimental.pallas import tpu as pltpu

BN_EPS = 1e-5
P_SHAKEDROP = 1.0                    # Bottleneck(..., p_shakedrop=1.0) in SMSEKD.__init__
SHAKE_SCALE = 1.0 - P_SHAKEDROP      # eval-mode ShakeDrop scale (== 0.0)
KD_WEIGHT = 0.1                      # 0.1 * T**2 with T = 1
K_PAD = 128                          # classes padded to one full lane width
NEG = -1e9                           # padded-class logit (exp underflows to exactly 0)

PIPELINE_BUDGET_BYTES = 24 * 1024 * 1024   # double-buffered fs+ft tiles (padding-aware)
VMEM_LIMIT_BYTES = 48 * 1024 * 1024        # < v7x 64 MiB physical; > v5e/v6e defaults


# --------------------------------------------------------------------------
# Fused per-level kernel.
#   grid = (n_par, n_steps): outer axis splits the batch ("parallel", one half per
#   TensorCore on v7x), inner axis streams lane-dense (b_half, C, t_hw) tiles and
#   accumulates per-channel spatial sums in VMEM ("arbitrary").  The finalize step
#   runs both BN-folded FC heads and the KL + CE partial loss for that batch half.
# --------------------------------------------------------------------------
def _level_loss_kernel(fs_ref, ft_ref, ws_ref, bs_ref, wt_ref, bt_ref, oh_ref,
                       o_ref, acc_s_ref, acc_t_ref, *,
                       ce_sign, inv_hw, inv_b, kd_weight, k_pad):
    step = pl.program_id(1)

    @pl.when(step == 0)
    def _init():
        acc_s_ref[...] = jnp.zeros_like(acc_s_ref)
        acc_t_ref[...] = jnp.zeros_like(acc_t_ref)

    # Bottleneck (eval, p_shakedrop=1.0) output == channel-zero-padded shortcut, so the
    # head's pooled input is just the spatial mean of the raw feature map (the padded
    # channels pool to 0 and their BN bias is folded into bias' in the wrapper).
    # Lane-axis reduce (XLU) is hidden under the DMA of this mem-bound kernel.
    acc_s_ref[...] += jnp.sum(fs_ref[...].astype(jnp.float32), axis=-1)
    acc_t_ref[...] += jnp.sum(ft_ref[...].astype(jnp.float32), axis=-1)

    @pl.when(step == pl.num_programs(1) - 1)
    def _finalize():
        pooled_s = acc_s_ref[...] * inv_hw                       # (b_half, Cs)
        pooled_t = acc_t_ref[...] * inv_hw                       # (b_half, Ct)
        s = jnp.dot(pooled_s, ws_ref[...],
                    preferred_element_type=jnp.float32) + bs_ref[...]   # (b_half, K_PAD)
        t = jnp.dot(pooled_t, wt_ref[...],
                    preferred_element_type=jnp.float32) + bt_ref[...]   # (b_half, K_PAD)
        oh = oh_ref[0]                                           # (b_half, K_PAD)

        # student log-softmax
        s_max = jnp.max(s, axis=1, keepdims=True)
        s_shift = s - s_max
        s_lse = jnp.log(jnp.sum(jnp.exp(s_shift), axis=1, keepdims=True))
        log_ps = s_shift - s_lse

        # teacher softmax / log-softmax
        t_max = jnp.max(t, axis=1, keepdims=True)
        t_shift = t - t_max
        t_exp = jnp.exp(t_shift)
        t_sum = jnp.sum(t_exp, axis=1, keepdims=True)
        log_t_sum = jnp.log(t_sum)
        p_t = t_exp * pl.reciprocal(t_sum, approx=True)          # 0 on padded cols
        log_pt = t_shift - log_t_sum

        kl_rows = jnp.sum(p_t * (log_pt - log_ps), axis=1, keepdims=True)  # (b_half, 1)
        lse_t = t_max + log_t_sum
        ce_rows = lse_t - jnp.sum(t * oh, axis=1, keepdims=True)           # (b_half, 1)

        # Partial (this batch half) of mean-over-full-batch losses; summed in wrapper.
        partial = jnp.sum(kd_weight * kl_rows + ce_sign * ce_rows,
                          axis=0, keepdims=True) * inv_b                   # (1, 1)
        o_ref[0] = partial


def _round_up(x, m):
    return -(-x // m) * m


def _pick_hw_tile(hw, b, cs, ct, itemsize, max_tile_hw=None,
                  pipeline_budget_bytes=PIPELINE_BUDGET_BYTES):
    """Largest lane-aligned divisor of hw whose double-buffered, padding-aware
    footprint (student + teacher tiles) fits the pipeline budget."""
    cands = sorted({d for d in range(128, hw + 1, 128) if hw % d == 0} | {hw})
    if max_tile_hw is not None:
        capped = [d for d in cands if d <= max_tile_hw]
        if capped:
            cands = capped

    def footprint(t):
        lanes = _round_up(t, 128)
        rows = _round_up(cs, 8) + _round_up(ct, 8)
        return 2 * b * rows * lanes * itemsize        # 2 pipeline buffers per input

    best = cands[0]
    for t in cands:
        if footprint(t) <= pipeline_budget_bytes:
            best = t
    return best


def level_loss(fs3, ft3, ws, bs, wt, bt, labels_oh, ce_sign, *,
               max_tile_hw=None, split_batch=True):
    B, Cs, HW = fs3.shape
    Bt, Ct, HWt = ft3.shape
    assert (B, HW) == (Bt, HWt)
    n_par = 2 if (split_batch and B >= 2 and B % 2 == 0) else 1
    b_half = B // n_par
    itemsize = max(jnp.dtype(fs3.dtype).itemsize, jnp.dtype(ft3.dtype).itemsize)
    t_hw = _pick_hw_tile(HW, b_half, Cs, Ct, itemsize, max_tile_hw)
    n_steps = HW // t_hw
    oh3 = labels_oh.reshape(n_par, b_half, K_PAD)

    kernel = functools.partial(_level_loss_kernel, ce_sign=ce_sign,
                               inv_hw=1.0 / float(HW), inv_b=1.0 / float(B),
                               kd_weight=KD_WEIGHT, k_pad=K_PAD)
    out = pl.pallas_call(
        kernel,
        out_shape=jax.ShapeDtypeStruct((n_par, 1, 1), jnp.float32),
        grid_spec=pltpu.PrefetchScalarGridSpec(
            num_scalar_prefetch=0,
            grid=(n_par, n_steps),
            in_specs=[
                pl.BlockSpec((b_half, Cs, t_hw), lambda p, i: (p, 0, i)),  # student slab
                pl.BlockSpec((b_half, Ct, t_hw), lambda p, i: (p, 0, i)),  # teacher slab
                pl.BlockSpec((Cs, K_PAD), lambda p, i: (0, 0)),            # student w'
                pl.BlockSpec((1, K_PAD), lambda p, i: (0, 0)),             # student bias'
                pl.BlockSpec((Ct, K_PAD), lambda p, i: (0, 0)),            # teacher w'
                pl.BlockSpec((1, K_PAD), lambda p, i: (0, 0)),             # teacher bias'
                pl.BlockSpec((1, b_half, K_PAD), lambda p, i: (p, 0, 0)),  # one-hot labels
            ],
            out_specs=pl.BlockSpec((1, 1, 1), lambda p, i: (p, 0, 0)),
            scratch_shapes=[pltpu.VMEM((b_half, Cs), jnp.float32),
                            pltpu.VMEM((b_half, Ct), jnp.float32)],
        ),
        compiler_params=pltpu.CompilerParams(
            dimension_semantics=("parallel", "arbitrary"),   # batch split | pooled sum
            vmem_limit_bytes=VMEM_LIMIT_BYTES),
    )(fs3, ft3, ws, bs, wt, bt, oh3)
    return jnp.sum(out)


# --------------------------------------------------------------------------
# Wrapper-side algebra (pure parameter manipulation, no feature-map work):
#   fold head BatchNorm into the FC, drop zero-padded shortcut channels, pad classes.
# --------------------------------------------------------------------------
def _fold_head_into_fc(head, n_rows):
    # head: s,b (1,C) folded BN scale/bias; w (C,K); bias (1,K)
    w_eff = head["s"].reshape(-1, 1) * head["w"]                 # (C, K)
    b_eff = head["b"] @ head["w"] + head["bias"]                 # (1, K) — includes the BN
    w_eff = w_eff[:n_rows]                                       #   bias of the zero-padded
    K = w_eff.shape[1]                                           #   shortcut channels
    assert K <= K_PAD
    w_pad = jnp.pad(w_eff, ((0, 0), (0, K_PAD - K)))
    b_pad = jnp.pad(b_eff, ((0, 0), (0, K_PAD - K)), constant_values=NEG)
    return w_pad, b_pad


def smsekd_forward(features_student, features_teacher, labels, params, num_classes,
                   only_alignment=False, max_tile_hw=None, split_batch=True):
    if SHAKE_SCALE != 0.0:
        # TODO(synk): p_shakedrop != 1.0 would need the full conv branch (im2col 3x3 as a
        # Pallas matmul chain); SMSEKD always constructs Bottleneck(..., p_shakedrop=1.0).
        raise NotImplementedError("fused path assumes eval-mode ShakeDrop with p_drop=1.0")
    assert num_classes <= K_PAD
    feats_t = features_teacher[1:]
    feats_s = features_student[1:]
    labels_oh = jax.nn.one_hot(labels, K_PAD, dtype=jnp.float32)
    ce_sign = 1.0 if only_alignment else -1.0
    total = jnp.float32(0.0)
    for i in range(len(feats_t)):
        fs, ft = feats_s[i], feats_t[i]
        B, Cs, H, W = fs.shape
        Ct = ft.shape[1]
        # Lane-dense NCHW pooling layout: merge trailing H,W dims (free, no transpose,
        # no dtype cast — the kernel casts per tile before accumulating in f32).
        fs3 = fs.reshape(B, Cs, H * W)
        ft3 = ft.reshape(B, Ct, H * W)
        ws, bs = _fold_head_into_fc(params["s_head"][i], n_rows=Cs)
        wt, bt = _fold_head_into_fc(params["t_head"][i], n_rows=Ct)
        total = total + level_loss(fs3, ft3, ws, bs, wt, bt, labels_oh, ce_sign,
                                   max_tile_hw=max_tile_hw, split_batch=split_batch)
    return total


# --------------------------------------------------------------------------
# Pure-JAX reference of the FULL, un-simplified module (eval mode), including the
# conv branch that ShakeDrop(p=1.0) zeros out.  Used only for in-script verification.
# --------------------------------------------------------------------------
def _bn_apply(x_nhwc, scale_1c, bias_1c):
    c = scale_1c.shape[-1]
    return x_nhwc * scale_1c.reshape(1, 1, 1, c) + bias_1c.reshape(1, 1, 1, c)


def _bottleneck_reference(x_nhwc, p, shake_scale):
    hi = jax.lax.Precision.HIGHEST
    h = _bn_apply(x_nhwc, p["s1"], p["b1"])
    h = jnp.einsum("bhwc,cd->bhwd", h, p["w1"], precision=hi)              # conv1 1x1
    h = jax.nn.relu(_bn_apply(h, p["s2"], p["b2"]))
    h = jax.lax.conv_general_dilated(h, p["w2"], (1, 1), "SAME",           # conv2 3x3
                                     dimension_numbers=("NHWC", "HWIO", "NHWC"),
                                     precision=hi)
    h = jax.nn.relu(_bn_apply(h, p["s3"], p["b3"]))
    h = jnp.einsum("bhwc,cd->bhwd", h, p["w3"], precision=hi)              # conv3 1x1
    h = _bn_apply(h, p["s4"], p["b4"])
    h = shake_scale * h                                                    # ShakeDrop (eval)
    cin, cout = x_nhwc.shape[-1], h.shape[-1]
    short = x_nhwc if cout == cin else jnp.pad(x_nhwc, ((0, 0), (0, 0), (0, 0),
                                                        (0, cout - cin)))
    return h + short


def _head_reference(f_nhwc, hp):
    z = _bn_apply(f_nhwc, hp["s"], hp["b"])
    pooled = jnp.mean(z, axis=(1, 2))                                      # pool + flatten
    return jnp.dot(pooled, hp["w"], precision=jax.lax.Precision.HIGHEST) + hp["bias"]


def smsekd_reference(features_student, features_teacher, labels, params, num_classes,
                     only_alignment=False):
    feats_t = features_teacher[1:]
    feats_s = features_student[1:]
    oh = jax.nn.one_hot(labels, num_classes, dtype=jnp.float32)
    ce_sign = 1.0 if only_alignment else -1.0
    total = jnp.float32(0.0)
    for i in range(len(feats_t)):
        fs = jnp.transpose(feats_s[i], (0, 2, 3, 1)).astype(jnp.float32)
        ft = jnp.transpose(feats_t[i], (0, 2, 3, 1)).astype(jnp.float32)
        fs = _bottleneck_reference(fs, params["s_emb"][i], SHAKE_SCALE)
        ft = _bottleneck_reference(ft, params["t_emb"][i], SHAKE_SCALE)
        ls = _head_reference(fs, params["s_head"][i])
        lt = _head_reference(ft, params["t_head"][i])
        log_ps = jax.nn.log_softmax(ls, axis=1)
        p_t = jax.nn.softmax(lt, axis=1)
        log_pt = jax.nn.log_softmax(lt, axis=1)
        kl = jnp.sum(p_t * (log_pt - log_ps)) / ls.shape[0]
        ce = jnp.mean(jax.nn.logsumexp(lt, axis=1) - jnp.sum(lt * oh, axis=1))
        total = total + KD_WEIGHT * kl + ce_sign * ce
    return total


# --------------------------------------------------------------------------
# Deterministic synthetic parameters (BN folded to eval-mode scale/bias)
# --------------------------------------------------------------------------
def _fold_bn(key, c):
    k1, k2, k3, k4 = jax.random.split(key, 4)
    gamma = 1.0 + 0.1 * jax.random.normal(k1, (c,), jnp.float32)
    beta = 0.1 * jax.random.normal(k2, (c,), jnp.float32)
    mean = 0.1 * jax.random.normal(k3, (c,), jnp.float32)
    var = jax.random.uniform(k4, (c,), jnp.float32, 0.5, 1.5)
    scale = gamma / jnp.sqrt(var + BN_EPS)
    bias = beta - mean * scale
    return scale.reshape(1, c), bias.reshape(1, c)


def init_bottleneck(key, inplanes, planes):
    # Conv/BN weights are only consumed by the full reference; with p_shakedrop=1.0 the
    # eval forward provably does not depend on them (verified numerically in __main__).
    ks = jax.random.split(key, 7)
    s1, b1 = _fold_bn(ks[0], inplanes)
    s2, b2 = _fold_bn(ks[1], planes)
    s3, b3 = _fold_bn(ks[2], planes)
    s4, b4 = _fold_bn(ks[3], planes)
    w1 = 0.05 * jax.random.normal(ks[4], (inplanes, planes), jnp.float32)
    w2 = 0.05 * jax.random.normal(ks[5], (3, 3, planes, planes), jnp.float32)   # HWIO
    w3 = 0.05 * jax.random.normal(ks[6], (planes, planes), jnp.float32)
    return dict(w1=w1, w2=w2, w3=w3, s1=s1, b1=b1, s2=s2, b2=b2,
                s3=s3, b3=b3, s4=s4, b4=b4)


def init_head(key, c, num_classes):
    k1, k2, k3 = jax.random.split(key, 3)
    s, b = _fold_bn(k1, c)
    w = 0.05 * jax.random.normal(k2, (c, num_classes), jnp.float32)
    bias = 0.05 * jax.random.normal(k3, (1, num_classes), jnp.float32)
    return dict(s=s, b=b, w=w, bias=bias)


if __name__ == "__main__":
    key = jax.random.PRNGKey(0)
    num_classes = 10
    batch = 2
    in_channels = [4, 8, 16]      # student channels per level
    out_channels = [8, 16, 32]    # teacher channels per level
    spatial = [32, 16, 8]         # level 0 is skipped by the module

    keys = jax.random.split(key, 8)
    features_student = [
        jax.random.normal(keys[i], (batch, in_channels[i], spatial[i], spatial[i]),
                          jnp.float32) for i in range(3)
    ]
    features_teacher = [
        jax.random.normal(keys[3 + i], (batch, out_channels[i], spatial[i], spatial[i]),
                          jnp.float32) for i in range(3)
    ]
    labels = jax.random.randint(keys[6], (batch,), 0, num_classes)

    pk = jax.random.split(keys[7], 4 * (len(in_channels) - 1))
    params = dict(t_emb=[], s_emb=[], t_head=[], s_head=[])
    for i, (fin, fout) in enumerate(zip(in_channels[1:], out_channels[1:])):
        params["t_emb"].append(init_bottleneck(pk[4 * i + 0], fout, fout))
        params["s_emb"].append(init_bottleneck(pk[4 * i + 1], fin, fout))
        params["t_head"].append(init_head(pk[4 * i + 2], fout, num_classes))
        params["s_head"].append(init_head(pk[4 * i + 3], fout, num_classes))

    # Fused Pallas forward (batch split across the parallel grid axis).
    loss = jax.block_until_ready(
        smsekd_forward(features_student, features_teacher, labels, params,
                       num_classes, only_alignment=False))
    # Force >= 2 pooling steps (exercises the tiled accumulator / "arbitrary" path).
    loss_tiled = jax.block_until_ready(
        smsekd_forward(features_student, features_teacher, labels, params,
                       num_classes, only_alignment=False, max_tile_hw=128))
    # Single-core path (no batch split).
    loss_nosplit = jax.block_until_ready(
        smsekd_forward(features_student, features_teacher, labels, params,
                       num_classes, only_alignment=False, split_batch=False))
    # only_alignment=True flips the CE sign.
    loss_align = jax.block_until_ready(
        smsekd_forward(features_student, features_teacher, labels, params,
                       num_classes, only_alignment=True))

    # Full, un-simplified module reference (eval semantics) for verification.
    ref = jax.block_until_ready(
        smsekd_reference(features_student, features_teacher, labels, params,
                         num_classes, only_alignment=False))
    ref_align = jax.block_until_ready(
        smsekd_reference(features_student, features_teacher, labels, params,
                         num_classes, only_alignment=True))

    assert loss.shape == () and bool(jnp.isfinite(loss))
    assert abs(float(loss) - float(ref)) < 1e-3, (float(loss), float(ref))
    assert abs(float(loss_tiled) - float(ref)) < 1e-3, (float(loss_tiled), float(ref))
    assert abs(float(loss_nosplit) - float(ref)) < 1e-3, (float(loss_nosplit), float(ref))
    assert abs(float(loss_align) - float(ref_align)) < 1e-3, (float(loss_align),
                                                              float(ref_align))
    print("KERNEL_OK")
</pallas_src>

<mosaic_0001>
module attributes {stable_mosaic.version = 11 : i64} {
  func.func @_level_loss_kernel(%arg0: i32, %arg1: i32, %arg2: memref<1x8x256xf32, #tpu.memory_space<vmem>>, %arg3: memref<1x16x256xf32, #tpu.memory_space<vmem>>, %arg4: memref<8x128xf32, #tpu.memory_space<vmem>>, %arg5: memref<1x128xf32, #tpu.memory_space<vmem>>, %arg6: memref<16x128xf32, #tpu.memory_space<vmem>>, %arg7: memref<1x128xf32, #tpu.memory_space<vmem>>, %arg8: memref<1x1x128xf32, #tpu.memory_space<vmem>>, %arg9: memref<1x1x1xf32, #tpu.memory_space<vmem>>, %arg10: memref<1x8xf32, #tpu.memory_space<vmem>>, %arg11: memref<1x16xf32, #tpu.memory_space<vmem>>) attributes {dimension_semantics = [#tpu.dimension_semantics<parallel>, #tpu.dimension_semantics<arbitrary>], iteration_bounds = array<i64: 2, 1>, scalar_prefetch = 0 : i64, scratch_operands = 2 : i64, tpu.core_type = #tpu.core_type<tc>, window_params = [{transform_indices = @transform_0, window_bounds = array<i64: 1, 8, 256>}, {transform_indices = @transform_1, window_bounds = array<i64: 1, 16, 256>}, {pipeline_mode = #tpu.pipeline_mode<synchronous>, transform_indices = @transform_2, window_bounds = array<i64: 8, 128>}, {pipeline_mode = #tpu.pipeline_mode<synchronous>, transform_indices = @transform_3, window_bounds = array<i64: 1, 128>}, {pipeline_mode = #tpu.pipeline_mode<synchronous>, transform_indices = @transform_4, window_bounds = array<i64: 16, 128>}, {pipeline_mode = #tpu.pipeline_mode<synchronous>, transform_indices = @transform_5, window_bounds = array<i64: 1, 128>}, {transform_indices = @transform_6, window_bounds = array<i64: 1, 1, 128>}, {transform_indices = @transform_7, window_bounds = array<i64: 1, 1, 1>}]} {
    %c0_i32 = arith.constant 0 : i32
    %0 = arith.cmpi eq, %arg1, %c0_i32 : i32
    %1 = arith.extui %0 : i1 to i32
    %c0_i32_0 = arith.constant 0 : i32
    %2 = arith.cmpi ne, %1, %c0_i32_0 : i32
    scf.if %2 {
      %cst_17 = arith.constant 0.000000e+00 : f32
      %16 = vector.broadcast %cst_17 : f32 to vector<1x8xf32>
      %c0_18 = arith.constant 0 : index
      %c0_19 = arith.constant 0 : index
      %17 = vector.load %arg10[%c0_18, %c0_19] : memref<1x8xf32, #tpu.memory_space<vmem>>, vector<1x8xf32>
      tpu.vector_store %arg10[%c0_18, %c0_19], %16 {strides = array<i32>} : memref<1x8xf32, #tpu.memory_space<vmem>>, vector<1x8xf32>,
      %cst_20 = arith.constant 0.000000e+00 : f32
      %18 = vector.broadcast %cst_20 : f32 to vector<1x16xf32>
      %c0_21 = arith.constant 0 : index
      %c0_22 = arith.constant 0 : index
      %19 = vector.load %arg11[%c0_21, %c0_22] : memref<1x16xf32, #tpu.memory_space<vmem>>, vector<1x16xf32>
      tpu.vector_store %arg11[%c0_21, %c0_22], %18 {strides = array<i32>} : memref<1x16xf32, #tpu.memory_space<vmem>>, vector<1x16xf32>,
    } else {
    }
    %c0 = arith.constant 0 : index
    %c0_1 = arith.constant 0 : index
    %3 = vector.load %arg10[%c0, %c0_1] : memref<1x8xf32, #tpu.memory_space<vmem>>, vector<1x8xf32>
    %c0_2 = arith.constant 0 : index
    %c0_3 = arith.constant 0 : index
    %c0_4 = arith.constant 0 : index
    %4 = vector.load %arg2[%c0_2, %c0_3, %c0_4] : memref<1x8x256xf32, #tpu.memory_space<vmem>>, vector<1x8x256xf32>
    %cst = arith.constant dense<0.000000e+00> : vector<1x8xf32>
    %5 = vector.multi_reduction <add>, %4, %cst [2] : vector<1x8x256xf32> to vector<1x8xf32>
    %6 = arith.addf %3, %5 : vector<1x8xf32>
    %c0_5 = arith.constant 0 : index
    %c0_6 = arith.constant 0 : index
    %7 = vector.load %arg10[%c0_5, %c0_6] : memref<1x8xf32, #tpu.memory_space<vmem>>, vector<1x8xf32>
    tpu.vector_store %arg10[%c0_5, %c0_6], %6 {strides = array<i32>} : memref<1x8xf32, #tpu.memory_space<vmem>>, vector<1x8xf32>,
    %c0_7 = arith.constant 0 : index
    %c0_8 = arith.constant 0 : index
    %8 = vector.load %arg11[%c0_7, %c0_8] : memref<1x16xf32, #tpu.memory_space<vmem>>, vector<1x16xf32>
    %c0_9 = arith.constant 0 : index
    %c0_10 = arith.constant 0 : index
    %c0_11 = arith.constant 0 : index
    %9 = vector.load %arg3[%c0_9, %c0_10, %c0_11] : memref<1x16x256xf32, #tpu.memory_space<vmem>>, vector<1x16x256xf32>
    %cst_12 = arith.constant dense<0.000000e+00> : vector<1x16xf32>
    %10 = vector.multi_reduction <add>, %9, %cst_12 [2] : vector<1x16x256xf32> to vector<1x16xf32>
    %11 = arith.addf %8, %10 : vector<1x16xf32>
    %c0_13 = arith.constant 0 : index
    %c0_14 = arith.constant 0 : index
    %12 = vector.load %arg11[%c0_13, %c0_14] : memref<1x16xf32, #tpu.memory_space<vmem>>, vector<1x16xf32>
    tpu.vector_store %arg11[%c0_13, %c0_14], %11 {strides = array<i32>} : memref<1x16xf32, #tpu.memory_space<vmem>>, vector<1x16xf32>,
    %c0_i32_15 = arith.constant 0 : i32
    %13 = arith.cmpi eq, %arg1, %c0_i32_15 : i32
    %14 = arith.extui %13 : i1 to i32
    %c0_i32_16 = arith.constant 0 : i32
    %15 = arith.cmpi ne, %14, %c0_i32_16 : i32
    scf.if %15 {
      %c0_17 = arith.constant 0 : index
      %c0_18 = arith.constant 0 : index
      %16 = vector.load %arg10[%c0_17, %c0_18] : memref<1x8xf32, #tpu.memory_space<vmem>>, vector<1x8xf32>
      %cst_19 = arith.constant 3.906250e-03 : f32
      %17 = vector.broadcast %cst_19 : f32 to vector<1x8xf32>
      %18 = arith.mulf %16, %17 : vector<1x8xf32>
      %c0_20 = arith.constant 0 : index
      %c0_21 = arith.constant 0 : index
      %19 = vector.load %arg11[%c0_20, %c0_21] : memref<1x16xf32, #tpu.memory_space<vmem>>, vector<1x16xf32>
      %cst_22 = arith.constant 3.906250e-03 : f32
      %20 = vector.broadcast %cst_22 : f32 to vector<1x16xf32>
      %21 = arith.mulf %19, %20 : vector<1x16xf32>
      %c0_23 = arith.constant 0 : index
      %c0_24 = arith.constant 0 : index
      %22 = vector.load %arg4[%c0_23, %c0_24] : memref<8x128xf32, #tpu.memory_space<vmem>>, vector<8x128xf32>
      %cst_25 = arith.constant dense<0.000000e+00> : vector<1x128xf32>
      %23 = tpu.matmul %18, %22, %cst_25 {dimension_numbers = #tpu.dot_dimension_numbers<[1], [0], [0], [1], [0, 0, 1, 1], [], []>} : vector<1x8xf32>, vector<8x128xf32>, vector<1x128xf32> -> vector<1x128xf32>
      %c0_26 = arith.constant 0 : index
      %c0_27 = arith.constant 0 : index
      %24 = vector.load %arg5[%c0_26, %c0_27] : memref<1x128xf32, #tpu.memory_space<vmem>>, vector<1x128xf32>
      %25 = arith.addf %23, %24 : vector<1x128xf32>
      %c0_28 = arith.constant 0 : index
      %c0_29 = arith.constant 0 : index
      %26 = vector.load %arg6[%c0_28, %c0_29] : memref<16x128xf32, #tpu.memory_space<vmem>>, vector<16x128xf32>
      %cst_30 = arith.constant dense<0.000000e+00> : vector<1x128xf32>
      %27 = tpu.matmul %21, %26, %cst_30 {dimension_numbers = #tpu.dot_dimension_numbers<[1], [0], [0], [1], [0, 0, 1, 1], [], []>} : vector<1x16xf32>, vector<16x128xf32>, vector<1x128xf32> -> vector<1x128xf32>
      %c0_31 = arith.constant 0 : index
      %c0_32 = arith.constant 0 : index
      %28 = vector.load %arg7[%c0_31, %c0_32] : memref<1x128xf32, #tpu.memory_space<vmem>>, vector<1x128xf32>
      %29 = arith.addf %27, %28 : vector<1x128xf32>
      %c0_33 = arith.constant 0 : index
      %c0_34 = arith.constant 0 : index
      %c0_35 = arith.constant 0 : index
      %30 = vector.load %arg8[%c0_33, %c0_34, %c0_35] : memref<1x1x128xf32, #tpu.memory_space<vmem>>, vector<1x1x128xf32>
      %31 = vector.shape_cast %30 : vector<1x1x128xf32> to vector<1x128xf32>
      %cst_36 = arith.constant dense<0xFF800000> : vector<1xf32>
      %32 = vector.multi_reduction <maximumf>, %25, %cst_36 [1] : vector<1x128xf32> to vector<1xf32>
      %33 = vector.shape_cast %32 : vector<1xf32> to vector<1x1xf32>
      %34 = vector.broadcast %33 : vector<1x1xf32> to vector<1x128xf32>
      %35 = arith.subf %25, %34 : vector<1x128xf32>
      %36 = math.exp %35 : vector<1x128xf32>
      %cst_37 = arith.constant dense<0.000000e+00> : vector<1xf32>
      %37 = vector.multi_reduction <add>, %36, %cst_37 [1] : vector<1x128xf32> to vector<1xf32>
      %38 = vector.shape_cast %37 : vector<1xf32> to vector<1x1xf32>
      %39 = math.log %38 : vector<1x1xf32>
      %40 = vector.broadcast %39 : vector<1x1xf32> to vector<1x128xf32>
      %41 = arith.subf %35, %40 : vector<1x128xf32>
      %cst_38 = arith.constant dense<0xFF800000> : vector<1xf32>
      %42 = vector.multi_reduction <maximumf>, %29, %cst_38 [1] : vector<1x128xf32> to vector<1xf32>
      %43 = vector.shape_cast %42 : vector<1xf32> to vector<1x1xf32>
      %44 = vector.broadcast %43 : vector<1x1xf32> to vector<1x128xf32>
      %45 = arith.subf %29, %44 : vector<1x128xf32>
      %46 = math.exp %45 : vector<1x128xf32>
      %cst_39 = arith.constant dense<0.000000e+00> : vector<1xf32>
      %47 = vector.multi_reduction <add>, %46, %cst_39 [1] : vector<1x128xf32> to vector<1xf32>
      %48 = vector.shape_cast %47 : vector<1xf32> to vector<1x1xf32>
      %49 = math.log %48 : vector<1x1xf32>
      %50 = tpu.reciprocal %48 {approx = true} : vector<1x1xf32> -> vector<1x1xf32>
      %51 = vector.broadcast %50 : vector<1x1xf32> to vector<1x128xf32>
      %52 = arith.mulf %46, %51 : vector<1x128xf32>
      %53 = vector.broadcast %49 : vector<1x1xf32> to vector<1x128xf32>
      %54 = arith.subf %45, %53 : vector<1x128xf32>
      %55 = arith.subf %54, %41 : vector<1x128xf32>
      %56 = arith.mulf %52, %55 : vector<1x128xf32>
      %cst_40 = arith.constant dense<0.000000e+00> : vector<1xf32>
      %57 = vector.multi_reduction <add>, %56, %cst_40 [1] : vector<1x128xf32> to vector<1xf32>
      %58 = vector.shape_cast %57 : vector<1xf32> to vector<1x1xf32>
      %59 = arith.addf %43, %49 : vector<1x1xf32>
      %60 = arith.mulf %29, %31 : vector<1x128xf32>
      %cst_41 = arith.constant dense<0.000000e+00> : vector<1xf32>
      %61 = vector.multi_reduction <add>, %60, %cst_41 [1] : vector<1x128xf32> to vector<1xf32>
      %62 = vector.shape_cast %61 : vector<1xf32> to vector<1x1xf32>
      %63 = arith.subf %59, %62 : vector<1x1xf32>
      %cst_42 = arith.constant 1.000000e-01 : f32
      %64 = vector.broadcast %cst_42 : f32 to vector<1x1xf32>
      %65 = arith.mulf %64, %58 : vector<1x1xf32>
      %cst_43 = arith.constant -1.000000e+00 : f32
      %66 = vector.broadcast %cst_43 : f32 to vector<1x1xf32>
      %67 = arith.mulf %66, %63 : vector<1x1xf32>
      %68 = arith.addf %65, %67 : vector<1x1xf32>
      %cst_44 = arith.constant dense<0.000000e+00> : vector<1xf32>
      %69 = vector.multi_reduction <add>, %68, %cst_44 [0] : vector<1x1xf32> to vector<1xf32>
      %70 = vector.shape_cast %69 : vector<1xf32> to vector<1x1xf32>
      %cst_45 = arith.constant 5.000000e-01 : f32
      %71 = vector.broadcast %cst_45 : f32 to vector<1x1xf32>
      %72 = arith.mulf %70, %71 : vector<1x1xf32>
      %c0_46 = arith.constant 0 : index
      %c0_47 = arith.constant 0 : index
      %c0_48 = arith.constant 0 : index
      %73 = vector.load %arg9[%c0_46, %c0_47, %c0_48] : memref<1x1x1xf32, #tpu.memory_space<vmem>>, vector<1x1x1xf32>
      %74 = vector.shape_cast %73 : vector<1x1x1xf32> to vector<1x1xf32>
      %75 = vector.shape_cast %72 : vector<1x1xf32> to vector<1x1x1xf32>
      tpu.vector_store %arg9[%c0_46, %c0_47, %c0_48], %75 {strides = array<i32>} : memref<1x1x1xf32, #tpu.memory_space<vmem>>, vector<1x1x1xf32>,
    } else {
    }
    return
  }
  func.func @transform_0(%arg0: i32, %arg1: i32) -> (i32, i32, i32) {
    %c0_i32 = arith.constant 0 : i32
    %c0_i32_0 = arith.constant 0 : i32
    return %arg0, %c0_i32, %arg1 : i32, i32, i32
  }
  func.func @transform_1(%arg0: i32, %arg1: i32) -> (i32, i32, i32) {
    %c0_i32 = arith.constant 0 : i32
    %c0_i32_0 = arith.constant 0 : i32
    return %arg0, %c0_i32, %arg1 : i32, i32, i32
  }
  func.func @transform_2(%arg0: i32, %arg1: i32) -> (i32, i32) {
    %c0_i32 = arith.constant 0 : i32
    %c0_i32_0 = arith.constant 0 : i32
    %c0_i32_1 = arith.constant 0 : i32
    return %c0_i32, %c0_i32_0 : i32, i32
  }
  func.func @transform_3(%arg0: i32, %arg1: i32) -> (i32, i32) {
    %c0_i32 = arith.constant 0 : i32
    %c0_i32_0 = arith.constant 0 : i32
    %c0_i32_1 = arith.constant 0 : i32
    return %c0_i32, %c0_i32_0 : i32, i32
  }
  func.func @transform_4(%arg0: i32, %arg1: i32) -> (i32, i32) {
    %c0_i32 = arith.constant 0 : i32
    %c0_i32_0 = arith.constant 0 : i32
    %c0_i32_1 = arith.constant 0 : i32
    return %c0_i32, %c0_i32_0 : i32, i32
  }
  func.func @transform_5(%arg0: i32, %arg1: i32) -> (i32, i32) {
    %c0_i32 = arith.constant 0 : i32
    %c0_i32_0 = arith.constant 0 : i32
    %c0_i32_1 = arith.constant 0 : i32
    return %c0_i32, %c0_i32_0 : i32, i32
  }
  func.func @transform_6(%arg0: i32, %arg1: i32) -> (i32, i32, i32) {
    %c0_i32 = arith.constant 0 : i32
    %c0_i32_0 = arith.constant 0 : i32
    %c0_i32_1 = arith.constant 0 : i32
    return %arg0, %c0_i32, %c0_i32_0 : i32, i32, i32
  }
  func.func @transform_7(%arg0: i32, %arg1: i32) -> (i32, i32, i32) {
    %c0_i32 = arith.constant 0 : i32
    %c0_i32_0 = arith.constant 0 : i32
    %c0_i32_1 = arith.constant 0 : i32
    return %arg0, %c0_i32, %c0_i32_0 : i32, i32, i32
  }
}

</mosaic_0001>

<llo_original>
// kernel: tpu_custom_call.1
$region0: #{tpu_custom_call.1}
  #allocation0 [shape = 'u32[]', space=smem, size = 0x4, offset = 0x4, fixed_abs, tag = 'smem constant byte address 0x4 - core index']
  #allocation1 [shape = 'u32[72,128]{1,0:T(1,128)}', space=vmem, size = 0x9000, scoped, tag = 'internal scratch']
  #allocation2 [shape = 'f32[1,8]{1,0:T(1,128)}', space=vmem, size = 0x200, scoped, tag = 'scratch operand']
  #allocation3 [shape = 'f32[1,16]{1,0:T(1,128)}', space=vmem, size = 0x200, scoped, tag = 'scratch operand']
  %s0 = inlined_call_operand.hbm [shape: f32[2,8,256], index: 0, kind: input, shape index: {}]
  %s1 = inlined_call_operand.hbm [shape: f32[2,16,256], index: 1, kind: input, shape index: {}]
  %s2 = inlined_call_operand.hbm [shape: f32[8,128], index: 2, kind: input, shape index: {}]
  %s3 = inlined_call_operand.vmem [shape: f32[1,128], index: 3, kind: input, shape index: {}]
  %s4 = inlined_call_operand.hbm [shape: f32[16,128], index: 4, kind: input, shape index: {}]
  %s5 = inlined_call_operand.vmem [shape: f32[1,128], index: 5, kind: input, shape index: {}]
  %s6 = inlined_call_operand.vmem [shape: f32[2,1,128], index: 6, kind: input, shape index: {}]
  %s7 = inlined_call_operand.vmem [shape: f32[2,1,1], index: 7, kind: output, shape index: {}]
  %s8 = sld [smem:[#allocation0]]
  $region85: #{tpu_custom_call.1} parent=0
    _
  %s10 = ssub.s32 1, %s8
  %s11 = scalar_select 0, %s10, %s8
  $region1: #{tpu_custom_call.1} parent=0
    #allocation4 [shape = 'u8[16384]{0}', space=vmem, size = 0x4000, scoped, tag = 'input window, operand 0']
    #allocation5 [shape = 's32[2]{0}', space=sflag, size = 0x8, scoped, tag = 'scoped memory for tpu_custom_call.1']
    #allocation6 [shape = 'u8[32768]{0}', space=vmem, size = 0x8000, scoped, tag = 'input window, operand 1']
    #allocation7 [shape = 's32[2]{0}', space=sflag, size = 0x8, scoped, tag = 'scoped memory for tpu_custom_call.1']
    #allocation8 [shape = 'u8[4096]{0}', space=vmem, size = 0x1000, scoped, tag = 'input window, operand 2, single buffered']
    #allocation9 [shape = 'u8[8192]{0}', space=vmem, size = 0x2000, scoped, tag = 'input window, operand 4, single buffered']
    #allocation10 [shape = 's32[1]{0}', space=sflag, size = 0x4, scoped, tag = 'scoped memory for tpu_custom_call.1']
    %12 = vsyncpa [#allocation5], 0
    %s13 = scalar_lea.sflag [#allocation5], 1
    %14 = vsyncpa %s13, 0
    %15 = vsyncpa [#allocation7], 0
    %s16 = scalar_lea.sflag [#allocation7], 1
    %17 = vsyncpa %s16, 0
    %18 = vsyncpa [#allocation10], 0
    loop: start=0, step=1, limit=4
    $region2: #{tpu_custom_call.1} parent=1 // loop_pre_header
      _
    $region3: #{tpu_custom_call.1} parent=1 // loop_header
      %s20 = sphi 0, %s24
      %p21 = scmp.ge.s32.totalorder %s20, 4
      %s27 = sphi 0, %s39
      %s28 = sphi 0, %s35
      %s29 = sphi 0, %s27
      %s30 = sphi 0, %s28
      %s31 = sphi 0, %s29
      %s32 = sphi 0, %s30
      %s44 = sphi 0, %s46
      %s47 = sphi 0, %s44
      %s48 = sphi 0, %s47
      %s64 = sphi 0, %s48
      %s72 = sphi 0, %s74
      %s75 = sphi 0, %s72
      %s76 = sphi 0, %s75
      %s92 = sphi 0, %s76
      %s96 = sphi 0, %s96
      %s98 = sphi 0, %s96
      %s99 = sphi 0, %s98
      %s113 = sphi 0, %s99
      %s117 = sphi 0, %s117
      %s119 = sphi 0, %s117
      %s120 = sphi 0, %s119
      %s134 = sphi 0, %s120
      %s138 = sphi 0, %s138
      %s140 = sphi 0, %s138
      %s141 = sphi 0, %s140
      %s155 = sphi 0, %s141
      %s159 = sphi 0, %s159
      %s161 = sphi 0, %s159
      %s162 = sphi 0, %s161
      %s176 = sphi 0, %s162
      %s182 = sphi 0, %s184
      %s185 = sphi 0, %s182
      %s186 = sphi 0, %s185
      %s202 = sphi 0, %s186
      %s208 = sphi 0, %s210
      %s211 = sphi 0, %s208
      %s212 = sphi 0, %s211
      %s228 = sphi 0, %s212
    $region4: #{tpu_custom_call.1} parent=1 // loop_header_branch
      %23 = sbr.rel (%p21) target = $region8
    $region5: #{tpu_custom_call.1} parent=1 // loop_body
      %s25 = ssub.s32 %s20, 1
      %s26 = ssub.s32 %s20, 2
      %s33 = sadd.s32 1, %s28
      %p34 = scmp.ge.s32.totalorder %s33, 1
      %s35 = scalar_select %p34, 0, %s33
      %s36 = sadd.s32 1, %s27
      %s37 = scalar_select %p34, %s36, %s27
      %p38 = scmp.ge.s32.totalorder %s37, 2
      %s39 = scalar_select %p38, 0, %s37
      %s40 = ssub.s32 %s27, %s39
      %s41 = ssub.s32 %s28, %s35
      %s42 = sor.u32 %s40, %s41
      %p43 = scmp.eq.s32.totalorder %s42, 0
      %s45 = sadd.s32 %s44, 1
      %s46 = scalar_select %p43, %s44, %s45
      %p49 = pneg %p43
      %p50 = scmp.eq.s32.totalorder %s20, 1
      %p51 = por %p49, %p50
      %p52 = scmp.ne.s32.totalorder %s44, %s47
      %p53 = scmp.eq.s32.totalorder %s20, 0
      %p54 = por %p52, %p53
      %p55 = scmp.ne.s32.totalorder %s44, %s47
      %p56 = scmp.eq.s32.totalorder %s25, 1
      %p57 = por %p55, %p56
      %p58 = scmp.ne.s32.totalorder %s47, %s48
      %p59 = scmp.eq.s32.totalorder %s25, 0
      %p60 = por %p58, %p59
      %p61 = scmp.ne.s32.totalorder %s47, %s48
      %p62 = scmp.eq.s32.totalorder %s26, 1
      %p63 = por %p61, %p62
      %p65 = scmp.ne.s32.totalorder %s48, %s64
      %p66 = scmp.eq.s32.totalorder %s26, 0
      %p67 = por %p65, %p66
      %s68 = ssub.s32 %s27, %s39
      %s69 = ssub.s32 %s28, %s35
      %s70 = sor.u32 %s68, %s69
      %p71 = scmp.eq.s32.totalorder %s70, 0
      %s73 = sadd.s32 %s72, 1
      %s74 = scalar_select %p71, %s72, %s73
      %p77 = pneg %p71
      %p78 = scmp.eq.s32.totalorder %s20, 1
      %p79 = por %p77, %p78
      %p80 = scmp.ne.s32.totalorder %s72, %s75
      %p81 = scmp.eq.s32.totalorder %s20, 0
      %p82 = por %p80, %p81
      %p83 = scmp.ne.s32.totalorder %s72, %s75
      %p84 = scmp.eq.s32.totalorder %s25, 1
      %p85 = por %p83, %p84
      %p86 = scmp.ne.s32.totalorder %s75, %s76
      %p87 = scmp.eq.s32.totalorder %s25, 0
      %p88 = por %p86, %p87
      %p89 = scmp.ne.s32.totalorder %s75, %s76
      %p90 = scmp.eq.s32.totalorder %s26, 1
      %p91 = por %p89, %p90
      %p93 = scmp.ne.s32.totalorder %s76, %s92
      %p94 = scmp.eq.s32.totalorder %s26, 0
      %p95 = por %p93, %p94
      %s97 = sadd.s32 %s96, 1
      %p100 = scmp.eq.s32.totalorder %s20, 1
      %p101 = scmp.ne.s32.totalorder %s96, %s98
      %p102 = scmp.eq.s32.totalorder %s20, 0
      %p103 = por %p101, %p102
      %p104 = scmp.ne.s32.totalorder %s96, %s98
      %p105 = scmp.eq.s32.totalorder %s25, 1
      %p106 = por %p104, %p105
      %p107 = scmp.ne.s32.totalorder %s98, %s99
      %p108 = scmp.eq.s32.totalorder %s25, 0
      %p109 = por %p107, %p108
      %p110 = scmp.ne.s32.totalorder %s98, %s99
      %p111 = scmp.eq.s32.totalorder %s26, 1
      %p112 = por %p110, %p111
      %p114 = scmp.ne.s32.totalorder %s99, %s113
      %p115 = scmp.eq.s32.totalorder %s26, 0
      %p116 = por %p114, %p115
      %s118 = sadd.s32 %s117, 1
      %p121 = scmp.eq.s32.totalorder %s20, 1
      %p122 = scmp.ne.s32.totalorder %s117, %s119
      %p123 = scmp.eq.s32.totalorder %s20, 0
      %p124 = por %p122, %p123
      %p125 = scmp.ne.s32.totalorder %s117, %s119
      %p126 = scmp.eq.s32.totalorder %s25, 1
      %p127 = por %p125, %p126
      %p128 = scmp.ne.s32.totalorder %s119, %s120
      %p129 = scmp.eq.s32.totalorder %s25, 0
      %p130 = por %p128, %p129
      %p131 = scmp.ne.s32.totalorder %s119, %s120
      %p132 = scmp.eq.s32.totalorder %s26, 1
      %p133 = por %p131, %p132
      %p135 = scmp.ne.s32.totalorder %s120, %s134
      %p136 = scmp.eq.s32.totalorder %s26, 0
      %p137 = por %p135, %p136
      %s139 = sadd.s32 %s138, 1
      %p142 = scmp.eq.s32.totalorder %s20, 1
      %p143 = scmp.ne.s32.totalorder %s138, %s140
      %p144 = scmp.eq.s32.totalorder %s20, 0
      %p145 = por %p143, %p144
      %p146 = scmp.ne.s32.totalorder %s138, %s140
      %p147 = scmp.eq.s32.totalorder %s25, 1
      %p148 = por %p146, %p147
      %p149 = scmp.ne.s32.totalorder %s140, %s141
      %p150 = scmp.eq.s32.totalorder %s25, 0
      %p151 = por %p149, %p150
      %p152 = scmp.ne.s32.totalorder %s140, %s141
      %p153 = scmp.eq.s32.totalorder %s26, 1
      %p154 = por %p152, %p153
      %p156 = scmp.ne.s32.totalorder %s141, %s155
      %p157 = scmp.eq.s32.totalorder %s26, 0
      %p158 = por %p156, %p157
      %s160 = sadd.s32 %s159, 1
      %p163 = scmp.eq.s32.totalorder %s20, 1
      %p164 = scmp.ne.s32.totalorder %s159, %s161
      %p165 = scmp.eq.s32.totalorder %s20, 0
      %p166 = por %p164, %p165
      %p167 = scmp.ne.s32.totalorder %s159, %s161
      %p168 = scmp.eq.s32.totalorder %s25, 1
      %p169 = por %p167, %p168
      %p170 = scmp.ne.s32.totalorder %s161, %s162
      %p171 = scmp.eq.s32.totalorder %s25, 0
      %p172 = por %p170, %p171
      %p173 = scmp.ne.s32.totalorder %s161, %s162
      %p174 = scmp.eq.s32.totalorder %s26, 1
      %p175 = por %p173, %p174
      %p177 = scmp.ne.s32.totalorder %s162, %s176
      %p178 = scmp.eq.s32.totalorder %s26, 0
      %p179 = por %p177, %p178
      %s180 = ssub.s32 %s27, %s39
      %p181 = scmp.eq.s32.totalorder %s180, 0
      %s183 = sadd.s32 %s182, 1
      %s184 = scalar_select %p181, %s182, %s183
      %p187 = pneg %p181
      %p188 = scmp.eq.s32.totalorder %s20, 1
      %p189 = por %p187, %p188
      %p190 = scmp.ne.s32.totalorder %s182, %s185
      %p191 = scmp.eq.s32.totalorder %s20, 0
      %p192 = por %p190, %p191
      %p193 = scmp.ne.s32.totalorder %s182, %s185
      %p194 = scmp.eq.s32.totalorder %s25, 1
      %p195 = por %p193, %p194
      %p196 = scmp.ne.s32.totalorder %s185, %s186
      %p197 = scmp.eq.s32.totalorder %s25, 0
      %p198 = por %p196, %p197
      %p199 = scmp.ne.s32.totalorder %s185, %s186
      %p200 = scmp.eq.s32.totalorder %s26, 1
      %p201 = por %p199, %p200
      %p203 = scmp.ne.s32.totalorder %s186, %s202
      %p204 = scmp.eq.s32.totalorder %s26, 0
      %p205 = por %p203, %p204
      %s206 = ssub.s32 %s27, %s39
      %p207 = scmp.eq.s32.totalorder %s206, 0
      %s209 = sadd.s32 %s208, 1
      %s210 = scalar_select %p207, %s208, %s209
      %p213 = pneg %p207
      %p214 = scmp.eq.s32.totalorder %s20, 1
      %p215 = por %p213, %p214
      %p216 = scmp.ne.s32.totalorder %s208, %s211
      %p217 = scmp.eq.s32.totalorder %s20, 0
      %p218 = por %p216, %p217
      %p219 = scmp.ne.s32.totalorder %s208, %s211
      %p220 = scmp.eq.s32.totalorder %s25, 1
      %p221 = por %p219, %p220
      %p222 = scmp.ne.s32.totalorder %s211, %s212
      %p223 = scmp.eq.s32.totalorder %s25, 0
      %p224 = por %p222, %p223
      %p225 = scmp.ne.s32.totalorder %s211, %s212
      %p226 = scmp.eq.s32.totalorder %s26, 1
      %p227 = por %p225, %p226
      %p229 = scmp.ne.s32.totalorder %s212, %s228
      %p230 = scmp.eq.s32.totalorder %s26, 0
      %p231 = por %p229, %p230
      %p232 = scmp.le.s32.totalorder 1, %s20
      %p233 = scmp.lt.s32.totalorder %s20, 3
      %p234 = pnand %p232, %p233
      %p235 = pneg %p234
      // Predicated region
      $region9: #{tpu_custom_call.1} parent=5 // pred_check
        _
      $region10: #{tpu_custom_call.1} parent=5 // pred_check_branch
        %237 = sbr.rel (%p234) target = $region12
      $region11: #{tpu_custom_call.1} parent=5 // pred_region
        %s238 = ssub.s32 %s20, 1
        // Predicated region
        $region13: #{tpu_custom_call.1} parent=11 // pred_check
          %p239 = pneg %p109
        $region14: #{tpu_custom_call.1} parent=11 // pred_check_branch
          %241 = sbr.rel (%p239) target = $region16
        $region15: #{tpu_custom_call.1} parent=11 // pred_region
          %243 = vsyncadd [#allocation7], 0
          %s245 = sshll.u32 %s2, 4
          %s246 = int_to_ptr.hbm [resolvable:$true] %s245
          %s247 = sshll.u32 [#allocation8], 4
          %s248 = int_to_ptr.vmem [resolvable:$true] %s247
          %250 = dma.hbm_to_vmem [thread:$0]  %s246, 128, %s248, [#allocation7]
        $region16: #{tpu_custom_call.1} parent=11 // pred_fallthru
          _
        // Predicated region
        $region17: #{tpu_custom_call.1} parent=11 // pred_check
          %p251 = pneg %p130
        $region18: #{tpu_custom_call.1} parent=11 // pred_check_branch
          %253 = sbr.rel (%p251) target = $region20
        $region19: #{tpu_custom_call.1} parent=11 // pred_region
          _
        $region20: #{tpu_custom_call.1} parent=11 // pred_fallthru
          _
        // Predicated region
        $region21: #{tpu_custom_call.1} parent=11 // pred_check
          %p254 = pneg %p151
        $region22: #{tpu_custom_call.1} parent=11 // pred_check_branch
          %256 = sbr.rel (%p254) target = $region24
        $region23: #{tpu_custom_call.1} parent=11 // pred_region
          %258 = vsyncadd [#allocation10], 0
          %s259 = sshll.u32 %s4, 4
          %s260 = int_to_ptr.hbm [resolvable:$true] %s259
          %s261 = sshll.u32 [#allocation9], 4
          %s262 = int_to_ptr.vmem [resolvable:$true] %s261
          %267 = dma.hbm_to_vmem [thread:$0]  %s260, 256, %s262, [#allocation10], 128, 128, 8
        $region24: #{tpu_custom_call.1} parent=11 // pred_fallthru
          _
        // Predicated region
        $region25: #{tpu_custom_call.1} parent=11 // pred_check
          %p268 = pneg %p172
        $region26: #{tpu_custom_call.1} parent=11 // pred_check_branch
          %270 = sbr.rel (%p268) target = $region28
        $region27: #{tpu_custom_call.1} parent=11 // pred_region
          _
        $region28: #{tpu_custom_call.1} parent=11 // pred_fallthru
          _
      $region12: #{tpu_custom_call.1} parent=5 // pred_fallthru
        _
      %p271 = scmp.lt.s32.totalorder %s20, 2
      // Predicated region
      $region29: #{tpu_custom_call.1} parent=5 // pred_check
        %p272 = pneg %p271
      $region30: #{tpu_custom_call.1} parent=5 // pred_check_branch
        %274 = sbr.rel (%p272) target = $region32
      $region31: #{tpu_custom_call.1} parent=5 // pred_region
        // Predicated region
        $region33: #{tpu_custom_call.1} parent=31 // pred_check
          %p275 = pneg %p54
        $region34: #{tpu_custom_call.1} parent=31 // pred_check_branch
          %277 = sbr.rel (%p275) target = $region36
        $region35: #{tpu_custom_call.1} parent=31 // pred_region
          %s278 = sand.u32 %s44, 1
          %s279 = scalar_lea.sflag [#allocation5], %s278
          %s280 = sand.u32 %s44, 1
          %s281 = smul.addr %s280, 16
          %s282 = scalar_lea.vmem [#allocation4], %s281
          %s283 = smul.u32 2, %s28
          %285 = vsyncadd %s279, 0
          %s286 = smul.addr %s27, 2
          %s287 = sadd.s32 %s283, %s286
          %s288 = smul.addr %s287, 8
          %s289 = scalar_lea.hbm %s0, %s288
          %s291 = sshll.u32 %s289, 4
          %s292 = int_to_ptr.hbm [resolvable:$true] %s291
          %s293 = sshll.u32 %s282, 4
          %s294 = int_to_ptr.vmem [resolvable:$true] %s293
          %296 = dma.hbm_to_vmem [thread:$0]  %s292, 256, %s294, %s279
        $region36: #{tpu_custom_call.1} parent=31 // pred_fallthru
          _
        // Predicated region
        $region37: #{tpu_custom_call.1} parent=31 // pred_check
          %p297 = pneg %p82
        $region38: #{tpu_custom_call.1} parent=31 // pred_check_branch
          %299 = sbr.rel (%p297) target = $region40
        $region39: #{tpu_custom_call.1} parent=31 // pred_region
          %s300 = sand.u32 %s20, 1
          %s301 = scalar_lea.sflag [#allocation7], %s300
          %s302 = sand.u32 %s72, 1
          %s303 = smul.addr %s302, 32
          %s304 = scalar_lea.vmem [#allocation6], %s303
          %s305 = smul.u32 2, %s28
          %307 = vsyncadd %s301, 0
          %s308 = smul.addr %s27, 4
          %s309 = sadd.s32 %s305, %s308
          %s310 = smul.addr %s309, 8
          %s311 = scalar_lea.hbm %s1, %s310
          %s312 = sshll.u32 %s311, 4
          %s313 = int_to_ptr.hbm [resolvable:$true] %s312
          %s314 = sshll.u32 %s304, 4
          %s315 = int_to_ptr.vmem [resolvable:$true] %s314
          %320 = dma.hbm_to_vmem [thread:$0]  %s313, 512, %s315, %s301, 256, 256, 16
        $region40: #{tpu_custom_call.1} parent=31 // pred_fallthru
          _
        // Predicated region
        $region41: #{tpu_custom_call.1} parent=31 // pred_check
          %p321 = pneg %p192
        $region42: #{tpu_custom_call.1} parent=31 // pred_check_branch
          %323 = sbr.rel (%p321) target = $region44
        $region43: #{tpu_custom_call.1} parent=31 // pred_region
          %p324 = scmp.lt.s32.totalorder %s27, 1
          %s325 = scalar_select %p324, %s27, 1
          %s326 = scalar_lea.vmem %s6, %s325
        $region44: #{tpu_custom_call.1} parent=31 // pred_fallthru
          _
      $region32: #{tpu_custom_call.1} parent=5 // pred_fallthru
        _
      %p327 = scmp.le.s32.totalorder 1, %s20
      %p328 = scmp.lt.s32.totalorder %s20, 3
      %p329 = pnand %p327, %p328
      %p330 = pneg %p329
      // Predicated region
      $region45: #{tpu_custom_call.1} parent=5 // pred_check
        _
      $region46: #{tpu_custom_call.1} parent=5 // pred_check_branch
        %332 = sbr.rel (%p329) target = $region48
      $region47: #{tpu_custom_call.1} parent=5 // pred_region
        %s333 = ssub.s32 %s20, 1
        %s334 = sand.u32 %s47, 1
        %s335 = scalar_lea.sflag [#allocation5], %s334
        %s336 = sand.u32 %s47, 1
        %s337 = smul.addr %s336, 16
        %s338 = scalar_lea.vmem [#allocation4], %s337
        // Predicated region
        $region49: #{tpu_custom_call.1} parent=47 // pred_check
          %p339 = pneg %p60
        $region50: #{tpu_custom_call.1} parent=47 // pred_check_branch
          %341 = sbr.rel (%p339) target = $region52
        $region51: #{tpu_custom_call.1} parent=47 // pred_region
          %343 = dma.done %s335, 256
        $region52: #{tpu_custom_call.1} parent=47 // pred_fallthru
          _
        %s344 = sand.u32 %s25, 1
        %s345 = scalar_lea.sflag [#allocation7], %s344
        %s346 = sand.u32 %s75, 1
        %s347 = smul.addr %s346, 32
        %s348 = scalar_lea.vmem [#allocation6], %s347
        // Predicated region
        $region53: #{tpu_custom_call.1} parent=47 // pred_check
          %p349 = pneg %p88
        $region54: #{tpu_custom_call.1} parent=47 // pred_check_branch
          %351 = sbr.rel (%p349) target = $region56
        $region55: #{tpu_custom_call.1} parent=47 // pred_region
          %353 = dma.done %s345, 512
        $region56: #{tpu_custom_call.1} parent=47 // pred_fallthru
          _
        // Predicated region
        $region57: #{tpu_custom_call.1} parent=47 // pred_check
          %p354 = pneg %p109
        $region58: #{tpu_custom_call.1} parent=47 // pred_check_branch
          %356 = sbr.rel (%p354) target = $region60
        $region59: #{tpu_custom_call.1} parent=47 // pred_region
          %358 = dma.done [#allocation7], 128
        $region60: #{tpu_custom_call.1} parent=47 // pred_fallthru
          _
        // Predicated region
        $region61: #{tpu_custom_call.1} parent=47 // pred_check
          %p359 = pneg %p151
        $region62: #{tpu_custom_call.1} parent=47 // pred_check_branch
          %361 = sbr.rel (%p359) target = $region64
        $region63: #{tpu_custom_call.1} parent=47 // pred_region
          %363 = dma.done [#allocation10], 256
        $region64: #{tpu_custom_call.1} parent=47 // pred_fallthru
          _
        %s364 = sand.u32 %s47, 1
        %s365 = scalar_lea.sflag [#allocation5], %s364
        %s366 = sand.u32 %s47, 1
        %s367 = smul.addr %s366, 16
        %s368 = scalar_lea.vmem [#allocation4], %s367
        %p369 = pneg %p60
        %p370 = pneg %p57
        %s371 = sand.u32 %s25, 1
        %s372 = scalar_lea.sflag [#allocation7], %s371
        %s373 = sand.u32 %s75, 1
        %s374 = smul.addr %s373, 32
        %s375 = scalar_lea.vmem [#allocation6], %s374
        %p376 = pneg %p88
        %p377 = pneg %p85
        %p378 = pneg %p109
        %p379 = pneg %p106
        %p380 = pneg %p130
        %p381 = pneg %p127
        %p382 = pneg %p151
        %p383 = pneg %p148
        %p384 = pneg %p172
        %p385 = pneg %p169
        %p386 = scmp.lt.s32.totalorder %s29, 1
        %s387 = scalar_select %p386, %s29, 1
        %s388 = scalar_lea.vmem %s6, %s387
        %p389 = pneg %p198
        %p390 = pneg %p195
        %p391 = pneg %p224
        %p392 = pneg %p221
        %p393 = scmp.lt.s32.totalorder %s29, 1
        %s394 = scalar_select %p393, %s29, 1
        %s395 = scalar_lea.vmem %s7, %s394
        %s396 = smul.u32 2, %s30
        %s397 = smul.u32 2, %s30
        %p398 = scmp.lt.s32.totalorder %s29, 1
        %s399 = scalar_select %p398, %s29, 1
        %s400 = scalar_lea.vmem %s6, %s399
        %p401 = scmp.lt.s32.totalorder %s29, 1
        %s402 = scalar_select %p401, %s29, 1
        %s403 = scalar_lea.vmem %s7, %s402
        %p404 = scmp.eq.s32.totalorder %s30, 0
        // Predicated region
        $region65: #{tpu_custom_call.1} parent=47 // pred_check
          %p405 = pneg %p404
        $region66: #{tpu_custom_call.1} parent=47 // pred_check_branch
          %407 = sbr.rel (%p405) target = $region68
        $region67: #{tpu_custom_call.1} parent=47 // pred_region
          %vm408 = vcmask 57344
          %409 = vst.msk [vmem:[#allocation2] sm:$0x1] %vm408, 0.0
          %vm410 = vcmask 122880
          %411 = vst.msk [vmem:[#allocation3] sm:$0x1] %vm410, 0.0
        $region68: #{tpu_custom_call.1} parent=47 // pred_fallthru
          _
        %v412 = vld [vmem:[#allocation2] sm:$0x1]
        %v413 = vld [vmem:[%s338] sm:$0xff]
        %v414 = vld [vmem:[%s338 + $0x8] sm:$0xff]
        %v415 = vadd.f32 %v413, %v414
        %416 = vadd.xlane.f32.xlu0 %v415
        %v417 = vpop.xlane.xlu0 %416
        %v419 = vperm.slane %v417, 0
        %v420 = vperm.slane %v417, 1
        %v421 = vperm.slane %v417, 2
        %v422 = vperm.slane %v417, 3
        %v423 = vperm.slane %v417, 4
        %v424 = vperm.slane %v417, 5
        %v425 = vperm.slane %v417, 6
        %v426 = vperm.slane %v417, 7
        %427 = vst [vmem:[#allocation1] ss:$9 sm:$0xff] %v419
        %s428 = scalar_lea.vmem [#allocation1], 1
        %429 = vst [vmem:[%s428] ss:$9 sm:$0xff] %v420
        %s430 = scalar_lea.vmem [#allocation1], 2
        %431 = vst [vmem:[%s430] ss:$9 sm:$0xff] %v421
        %s432 = scalar_lea.vmem [#allocation1], 3
        %433 = vst [vmem:[%s432] ss:$9 sm:$0xff] %v422
        %s434 = scalar_lea.vmem [#allocation1], 4
        %435 = vst [vmem:[%s434] ss:$9 sm:$0xff] %v423
        %s436 = scalar_lea.vmem [#allocation1], 5
        %437 = vst [vmem:[%s436] ss:$9 sm:$0xff] %v424
        %s438 = scalar_lea.vmem [#allocation1], 6
        %439 = vst [vmem:[%s438] ss:$9 sm:$0xff] %v425
        %s440 = scalar_lea.vmem [#allocation1], 7
        %441 = vst [vmem:[%s440] ss:$9 sm:$0xff] %v426
        %v442 = vld [vmem:[#allocation1] sm:$0xff]
        %443 = vset.pattern.permute.xlu0 0
        %444 = vperm.xlu0 %443, %v442
        %v445 = vpop.permute.xlu0 %444
        %v446 = vlaneseq
        %v447 = vand.u32 %v446, 127
        %v448 = vperm.slane %v445, %v447
        %v450 = vadd.f32 %v412, %v448
        %vm451 = vcmask 57344
        %452 = vst.msk [vmem:[#allocation2] sm:$0x1] %vm451, %v450
        %v453 = vld [vmem:[#allocation3] sm:$0x1]
        %v454 = vld [vmem:[%s348] sm:$0xff]
        %v455 = vld [vmem:[%s348 + $0x8] sm:$0xff]
        %v456 = vld [vmem:[%s348 + $0x10] sm:$0xff]
        %v457 = vld [vmem:[%s348 + $0x18] sm:$0xff]
        %v458 = vadd.f32 %v454, %v455
        %459 = vadd.xlane.f32.xlu0 %v458
        %v460 = vpop.xlane.xlu0 %459
        %v461 = vadd.f32 %v456, %v457
        %462 = vadd.xlane.f32.xlu0 %v461
        %v463 = vpop.xlane.xlu0 %462
        %v466 = vperm.slane %v460, 0
        %v467 = vperm.slane %v460, 1
        %v468 = vperm.slane %v460, 2
        %v469 = vperm.slane %v460, 3
        %v470 = vperm.slane %v460, 4
        %v471 = vperm.slane %v460, 5
        %v472 = vperm.slane %v460, 6
        %v473 = vperm.slane %v460, 7
        %v474 = vperm.slane %v463, 0
        %v475 = vperm.slane %v463, 1
        %v476 = vperm.slane %v463, 2
        %v477 = vperm.slane %v463, 3
        %v478 = vperm.slane %v463, 4
        %v479 = vperm.slane %v463, 5
        %v480 = vperm.slane %v463, 6
        %v481 = vperm.slane %v463, 7
        %482 = vst [vmem:[#allocation1] ss:$9 sm:$0xff] %v466
        %s483 = scalar_lea.vmem [#allocation1], 1
        %484 = vst [vmem:[%s483] ss:$9 sm:$0xff] %v467
        %s485 = scalar_lea.vmem [#allocation1], 2
        %486 = vst [vmem:[%s485] ss:$9 sm:$0xff] %v468
        %s487 = scalar_lea.vmem [#allocation1], 3
        %488 = vst [vmem:[%s487] ss:$9 sm:$0xff] %v469
        %s489 = scalar_lea.vmem [#allocation1], 4
        %490 = vst [vmem:[%s489] ss:$9 sm:$0xff] %v470
        %s491 = scalar_lea.vmem [#allocation1], 5
        %492 = vst [vmem:[%s491] ss:$9 sm:$0xff] %v471
        %s493 = scalar_lea.vmem [#allocation1], 6
        %494 = vst [vmem:[%s493] ss:$9 sm:$0xff] %v472
        %s495 = scalar_lea.vmem [#allocation1], 7
        %496 = vst [vmem:[%s495] ss:$9 sm:$0xff] %v473
        %v497 = vld [vmem:[#allocation1] sm:$0xff]
        %498 = vst [vmem:[#allocation1] ss:$9 sm:$0xff] %v474
        %499 = vst [vmem:[%s483] ss:$9 sm:$0xff] %v475
        %500 = vst [vmem:[%s485] ss:$9 sm:$0xff] %v476
        %501 = vst [vmem:[%s487] ss:$9 sm:$0xff] %v477
        %502 = vst [vmem:[%s489] ss:$9 sm:$0xff] %v478
        %503 = vst [vmem:[%s491] ss:$9 sm:$0xff] %v479
        %504 = vst [vmem:[%s493] ss:$9 sm:$0xff] %v480
        %505 = vst [vmem:[%s495] ss:$9 sm:$0xff] %v481
        %v506 = vld [vmem:[#allocation1] sm:$0xff]
        %507 = vset.pattern.permute.xlu0 0
        %508 = vperm.xlu0 %507, %v497
        %v509 = vpop.permute.xlu0 %508
        %510 = vset.pattern.permute.xlu0 0
        %511 = vperm.xlu0 %510, %v506
        %v512 = vpop.permute.xlu0 %511
        %v513 = vperm.slane %v509, %v447
        %v514 = vadd.s32 %v447, 4294967288
        %v515 = vperm.slane %v512, %v514
        %vm516 = vcmask 130112
        %v517 = vsel %vm516, %v515, %v513
        %v519 = vadd.f32 %v453, %v517
        %vm520 = vcmask 122880
        %521 = vst.msk [vmem:[#allocation3] sm:$0x1] %vm520, %v519
        // Predicated region
        $region69: #{tpu_custom_call.1} parent=47 // pred_check
          %p522 = pneg %p404
        $region70: #{tpu_custom_call.1} parent=47 // pred_check_branch
          %524 = sbr.rel (%p522) target = $region72
        $region71: #{tpu_custom_call.1} parent=47 // pred_region
          %v525 = vld [vmem:[#allocation2] sm:$0x1]
          %v526 = vmul.f32 %v525, 0.00390625
          %v527 = vld [vmem:[#allocation3] sm:$0x1]
          %v528 = vmul.f32 %v527, 0.00390625
          %v529 = vld [vmem:[#allocation8] sm:$0xff]
          %v530 = vld [vmem:[%s3] sm:$0x1]
          %vm531 = vcmask 64512
          %v533 = vsel %vm531, %v526, 0
          %535 = vmatpush.msra.mxu0 0.0
          %536 = vmatpush.msra.mxu0 0.0
          %537 = vmatpush.msra.mxu0 0.0
          %538 = vmatpush.msra.mxu0 0.0
          %539 = vmatpush.msra.mxu0 0.0
          %540 = vmatpush.msra.mxu0 0.0
          %541 = vmatpush.msra.mxu0 0.0
          %542 = vmatpush.msra.mxu0 0.0
          %543 = vmatpush.msra.mxu0 0.0
          %544 = vmatpush.msra.mxu0 0.0
          %545 = vmatpush.msra.mxu0 0.0
          %546 = vmatpush.msra.mxu0 0.0
          %547 = vmatpush.msra.mxu0 0.0
          %548 = vmatpush.msra.mxu0 0.0
          %549 = vmatpush.msra.mxu0 0.0
          %550 = vmatpush.msra.mxu0 %v529
          %551 = vmatmul.f32.gmra.mxu0 %v533
          %v552 = vpop.f32.mrf.mxu0
          %v553 = vadd.f32 %v530, %v552
          %554 = vdwg.mxu0
          %v555 = vld [vmem:[#allocation9] sm:$0xff]
          %v556 = vld [vmem:[#allocation9 + $0x8] sm:$0xff]
          %v557 = vld [vmem:[%s5] sm:$0x1]
          %vm558 = vcmask 130048
          %v560 = vsel %vm558, %v528, 0
          %562 = vmatpush.msra.mxu0 0.0
          %563 = vmatpush.msra.mxu0 0.0
          %564 = vmatpush.msra.mxu0 0.0
          %565 = vmatpush.msra.mxu0 0.0
          %566 = vmatpush.msra.mxu0 0.0
          %567 = vmatpush.msra.mxu0 0.0
          %568 = vmatpush.msra.mxu0 0.0
          %569 = vmatpush.msra.mxu0 0.0
          %570 = vmatpush.msra.mxu0 0.0
          %571 = vmatpush.msra.mxu0 0.0
          %572 = vmatpush.msra.mxu0 0.0
          %573 = vmatpush.msra.mxu0 0.0
          %574 = vmatpush.msra.mxu0 0.0
          %575 = vmatpush.msra.mxu0 0.0
          %576 = vmatpush.msra.mxu0 %v556
          %577 = vmatpush.msra.mxu0 %v555
          %578 = vmatmul.f32.gmra.mxu0 %v560
          %v579 = vpop.f32.mrf.mxu0
          %v580 = vadd.f32 %v557, %v579
          %581 = vdwg.mxu0
          %v582 = vld [vmem:[%s400] sm:$0x1]
          %vm583 = vcmask 1040384
          %v584 = vsel %vm583, %v553, -inf
          %585 = vmax.xlane.f32.xlu0 %v584
          %v586 = vpop.xlane.xlu0 %585
          %v587 = vsub.f32 %v553, %v586
          %v588 = vmul.f32 %v587, 1.442695
          %v589 = vpow.pop %v588
          %v590 = vsel %vm583, %v589, 0.0
          %591 = vadd.xlane.f32.xlu0 %v590
          %v592 = vpop.xlane.xlu0 %591
          %v593 = vlog2.pop %v592
          %v594 = vmul.f32 %v593, 0.6931472
          %v595 = vsub.f32 %v587, %v594
          %v596 = vsel %vm583, %v580, -inf
          %597 = vmax.xlane.f32.xlu0 %v596
          %v598 = vpop.xlane.xlu0 %597
          %v599 = vsub.f32 %v580, %v598
          %v600 = vmul.f32 %v599, 1.442695
          %v601 = vpow.pop %v600
          %v602 = vsel %vm583, %v601, 0.0
          %603 = vadd.xlane.f32.xlu0 %v602
          %v604 = vpop.xlane.xlu0 %603
          %v605 = vlog2.pop %v604
          %v606 = vmul.f32 %v605, 0.6931472
          %v607 = vrcp.pop %v604
          %v608 = vmul.f32 %v601, %v607
          %v609 = vsub.f32 %v599, %v606
          %v610 = vsub.f32 %v609, %v595
          %v611 = vmul.f32 %v608, %v610
          %v612 = vsel %vm583, %v611, 0.0
          %613 = vadd.xlane.f32.xlu0 %v612
          %v614 = vpop.xlane.xlu0 %613
          %v615 = vadd.f32 %v598, %v606
          %v616 = vmul.f32 %v580, %v582
          %v617 = vsel %vm583, %v616, 0.0
          %618 = vadd.xlane.f32.xlu0 %v617
          %v619 = vpop.xlane.xlu0 %618
          %v620 = vsub.f32 %v615, %v619
          %v621 = vmul.f32 %v614, 0.1
          %v622 = vmul.f32 %v620, -1.0
          %v623 = vadd.f32 %v621, %v622
          %v624 = vadd.f32 %v623, 0.0
          %v625 = vmul.f32 %v624, 0.5
          %vm626 = vcmask 0
          %627 = vst.msk [vmem:[%s403] sm:$0x1] %vm626, %v625
        $region72: #{tpu_custom_call.1} parent=47 // pred_fallthru
          _
        %p628 = scmp.lt.s32.totalorder %s29, 1
        %s629 = scalar_select %p628, %s29, 1
        %s630 = scalar_lea.vmem %s7, %s629
        // Predicated region
        $region73: #{tpu_custom_call.1} parent=47 // pred_check
          %p631 = pneg %p221
        $region74: #{tpu_custom_call.1} parent=47 // pred_check_branch
          %633 = sbr.rel (%p631) target = $region76
        $region75: #{tpu_custom_call.1} parent=47 // pred_region
          _
        $region76: #{tpu_custom_call.1} parent=47 // pred_fallthru
          _
      $region48: #{tpu_custom_call.1} parent=5 // pred_fallthru
        _
      %p634 = scmp.le.s32.totalorder 2, %s20
      // Predicated region
      $region77: #{tpu_custom_call.1} parent=5 // pred_check
        %p635 = pneg %p634
      $region78: #{tpu_custom_call.1} parent=5 // pred_check_branch
        %637 = sbr.rel (%p635) target = $region80
      $region79: #{tpu_custom_call.1} parent=5 // pred_region
        %s638 = ssub.s32 %s20, 2
        // Predicated region
        $region81: #{tpu_custom_call.1} parent=79 // pred_check
          %p639 = pneg %p227
        $region82: #{tpu_custom_call.1} parent=79 // pred_check_branch
          %641 = sbr.rel (%p639) target = $region84
        $region83: #{tpu_custom_call.1} parent=79 // pred_region
          %p642 = scmp.lt.s32.totalorder %s31, 1
          %s643 = scalar_select %p642, %s31, 1
          %s644 = scalar_lea.vmem %s7, %s643
        $region84: #{tpu_custom_call.1} parent=79 // pred_fallthru
          _
      $region80: #{tpu_custom_call.1} parent=5 // pred_fallthru
        _
    $region6: #{tpu_custom_call.1} parent=1 // loop_footer
      %s24 = sadd.s32 1, %s20
    $region7: #{tpu_custom_call.1} parent=1 // loop_footer_branch
      %19 = sbr.rel target = $region3
    $region8: #{tpu_custom_call.1} parent=1 // loop_exit
      _
    %645 = vsyncpa [#allocation5], 1
    %s646 = scalar_lea.sflag [#allocation5], 1
    %647 = vsyncpa %s646, 1
    %648 = vsyncpa [#allocation7], 1
    %s649 = scalar_lea.sflag [#allocation7], 1
    %650 = vsyncpa %s649, 1
    %651 = vsyncpa [#allocation10], 1

</llo_original>
